<compile_context>
chip_gen: v5e
topology: v5e:2x2
jax: 0.10.0
libtpu: 0.0.40
codegen_flags: <defaults>
</compile_context>

<pallas_src>
import jax
import jax.numpy as jnp
from jax.experimental import pallas as pl
from jax.experimental.pallas import tpu as pltpu


def _dm_kernel(inp_ref, samp_ref, out_ref):
    # inp_ref:  (B, D)    bf16   -- doc vector + context-sum per batch row
    # samp_ref: (B, S, D) bf16   -- the S sampled output columns per batch row
    # out_ref:  (B, S)    f32
    inp = inp_ref[...].astype(jnp.float32)            # (B, D)  f32 accumulate
    samp = samp_ref[...].astype(jnp.float32)          # (B, S, D)
    # result[b, s] = <inputs[b, :], outputs[:, sample_ids[b, s]]>
    out_ref[...] = jnp.sum(samp * inp[:, None, :], axis=-1)   # (B, S)


def distributed_memory_forward(paragraph_matrix, word_matrix, outputs,
                               doc_ids, context_ids, sample_ids):
    B, S = sample_ids.shape
    D = paragraph_matrix.shape[1]

    # --- XLA glue (data-dependent gathers; gather + reduce + add fuse) --------
    # PV-DM input vectors: doc embedding + sum of context word embeddings.
    inputs = paragraph_matrix[doc_ids] + jnp.sum(word_matrix[context_ids], axis=1)  # (B, D) f32

    # Gather ONLY the sampled output columns (no full (D,V) pass, no full
    # logits): outputs[:, sample_ids] -> (D, B, S), transposed to (B, S, D).
    sampled = jnp.transpose(outputs[:, sample_ids], (1, 2, 0))                      # (B, S, D) f32

    # bf16 at the kernel boundary (halves DMA bytes); f32 accumulation inside.
    inputs_bf = inputs.astype(jnp.bfloat16)
    sampled_bf = sampled.astype(jnp.bfloat16)

    cost = pl.CostEstimate(
        flops=2 * B * S * D,
        transcendentals=0,
        bytes_accessed=2 * (B * D + B * S * D) + 4 * B * S,
    )

    result = pl.pallas_call(
        _dm_kernel,
        out_shape=jax.ShapeDtypeStruct((B, S), jnp.float32),
        grid_spec=pltpu.PrefetchScalarGridSpec(
            num_scalar_prefetch=0,
            grid=(1,),  # whole (tiny) problem in one block; no V dim in-kernel
            in_specs=[
                pl.BlockSpec((B, D), lambda i: (0, 0)),
                pl.BlockSpec((B, S, D), lambda i: (0, 0, 0)),
            ],
            out_specs=pl.BlockSpec((B, S), lambda i: (0, 0)),
        ),
        compiler_params=pltpu.CompilerParams(
            dimension_semantics=("arbitrary",)),
        cost_estimate=cost,
    )(inputs_bf, sampled_bf)

    # Match torch's .squeeze(): drop any size-1 dims (B == 1 or S == 1).
    return jnp.squeeze(result)


if __name__ == "__main__":
    key = jax.random.PRNGKey(0)
    k1, k2, k3, k4, k5, k6 = jax.random.split(key, 6)

    # Small shapes consistent with the module: vec_dim=32, n_docs=16, n_words=64
    vec_dim, n_docs, n_words = 32, 16, 64
    B, C, S = 4, 8, 8   # batch, context window, negative-sample count

    paragraph_matrix = jax.random.normal(k1, (n_docs, vec_dim), dtype=jnp.float32)
    word_matrix = jax.random.normal(k2, (n_words, vec_dim), dtype=jnp.float32)
    # Module init is torch.zeros(vec_dim, n_words); use deterministic randn here
    # so the numerical check against the reference is non-trivial.
    outputs = jax.random.normal(k3, (vec_dim, n_words), dtype=jnp.float32)

    doc_ids = jax.random.randint(k4, (B,), 0, n_docs)
    context_ids = jax.random.randint(k5, (B, C), 0, n_words)
    sample_ids = jax.random.randint(k6, (B, S), 0, n_words)

    result = distributed_memory_forward(paragraph_matrix, word_matrix, outputs,
                                        doc_ids, context_ids, sample_ids)
    result = jax.block_until_ready(result)

    # Pure-JAX f32 reference mirroring the PyTorch forward.
    inputs_ref = paragraph_matrix[doc_ids] + jnp.sum(word_matrix[context_ids], axis=1)
    out_perm = jnp.transpose(outputs[:, sample_ids], (1, 0, 2))              # (B, D, S)
    ref = jnp.squeeze(
        jnp.einsum("bkd,bds->bks", inputs_ref[:, None, :], out_perm)
    )                                                                        # (B, S)

    assert result.shape == (B, S), result.shape
    # Tolerance loosened vs the pure-f32 version because the kernel operands are
    # cast to bf16 at the boundary (accumulation is still f32).
    assert jnp.allclose(result, ref, atol=0.5, rtol=5e-2), "mismatch vs reference"
    print("KERNEL_OK")
</pallas_src>

<mosaic_0001>
module attributes {stable_mosaic.version = 11 : i64} {
  func.func @_dm_kernel(%arg0: i32, %arg1: memref<4x32xbf16, #tpu.memory_space<vmem>>, %arg2: memref<4x8x32xbf16, #tpu.memory_space<vmem>>, %arg3: memref<4x8xf32, #tpu.memory_space<vmem>>) attributes {dimension_semantics = [#tpu.dimension_semantics<arbitrary>], iteration_bounds = array<i64: 1>, scalar_prefetch = 0 : i64, scratch_operands = 0 : i64, tpu.core_type = #tpu.core_type<tc>, window_params = [{pipeline_mode = #tpu.pipeline_mode<synchronous>, transform_indices = @transform_0, window_bounds = array<i64: 4, 32>}, {pipeline_mode = #tpu.pipeline_mode<synchronous>, transform_indices = @transform_1, window_bounds = array<i64: 4, 8, 32>}, {pipeline_mode = #tpu.pipeline_mode<synchronous>, transform_indices = @transform_2, window_bounds = array<i64: 4, 8>}]} {
    %c0 = arith.constant 0 : index
    %c0_0 = arith.constant 0 : index
    %0 = vector.load %arg1[%c0, %c0_0] : memref<4x32xbf16, #tpu.memory_space<vmem>>, vector<4x32xbf16>
    %1 = arith.extf %0 : vector<4x32xbf16> to vector<4x32xf32>
    %c0_1 = arith.constant 0 : index
    %c0_2 = arith.constant 0 : index
    %c0_3 = arith.constant 0 : index
    %2 = vector.load %arg2[%c0_1, %c0_2, %c0_3] : memref<4x8x32xbf16, #tpu.memory_space<vmem>>, vector<4x8x32xbf16>
    %3 = arith.extf %2 : vector<4x8x32xbf16> to vector<4x8x32xf32>
    %4 = vector.shape_cast %1 : vector<4x32xf32> to vector<4x1x32xf32>
    %5 = vector.broadcast %4 : vector<4x1x32xf32> to vector<4x8x32xf32>
    %6 = arith.mulf %3, %5 : vector<4x8x32xf32>
    %cst = arith.constant dense<0.000000e+00> : vector<4x8xf32>
    %7 = vector.multi_reduction <add>, %6, %cst [2] : vector<4x8x32xf32> to vector<4x8xf32>
    %c0_4 = arith.constant 0 : index
    %c0_5 = arith.constant 0 : index
    %8 = vector.load %arg3[%c0_4, %c0_5] : memref<4x8xf32, #tpu.memory_space<vmem>>, vector<4x8xf32>
    tpu.vector_store %arg3[%c0_4, %c0_5], %7 {strides = array<i32>} : memref<4x8xf32, #tpu.memory_space<vmem>>, vector<4x8xf32>,
    return
  }
  func.func @transform_0(%arg0: i32) -> (i32, i32) {
    %c0_i32 = arith.constant 0 : i32
    %c0_i32_0 = arith.constant 0 : i32
    %c0_i32_1 = arith.constant 0 : i32
    return %c0_i32, %c0_i32_0 : i32, i32
  }
  func.func @transform_1(%arg0: i32) -> (i32, i32, i32) {
    %c0_i32 = arith.constant 0 : i32
    %c0_i32_0 = arith.constant 0 : i32
    %c0_i32_1 = arith.constant 0 : i32
    %c0_i32_2 = arith.constant 0 : i32
    return %c0_i32, %c0_i32_0, %c0_i32_1 : i32, i32, i32
  }
  func.func @transform_2(%arg0: i32) -> (i32, i32) {
    %c0_i32 = arith.constant 0 : i32
    %c0_i32_0 = arith.constant 0 : i32
    %c0_i32_1 = arith.constant 0 : i32
    return %c0_i32, %c0_i32_0 : i32, i32
  }
}

</mosaic_0001>

<llo_original>
// kernel: tpu_custom_call.1
$region0: #{tpu_custom_call.1}
  #allocation0 [shape = 'u32[]', space=smem, size = 0x4, offset = 0x4, fixed_abs, tag = 'smem constant byte address 0x4 - core index']
  #allocation1 [shape = 'u32[72,128]{1,0:T(1,128)}', space=vmem, size = 0x9000, scoped, tag = 'internal scratch']
  %s0 = inlined_call_operand.hbm [shape: bf16[4,32], index: 0, kind: input, shape index: {}]
  %s1 = inlined_call_operand.hbm [shape: bf16[4,8,32], index: 1, kind: input, shape index: {}]
  %s2 = inlined_call_operand.hbm [shape: f32[4,8], index: 2, kind: output, shape index: {}]
  %s3 = sld [smem:[#allocation0]]
  $region26: #{tpu_custom_call.1} parent=0
    _
  %s5 = ssub.s32 1, %s3
  %s6 = scalar_select 0, %s5, %s3
  $region1: #{tpu_custom_call.1} parent=0
    #allocation2 [shape = 'u8[1024]{0}', space=vmem, size = 0x400, scoped, tag = 'input window, operand 0, single buffered']
    #allocation3 [shape = 's32[1]{0}', space=sflag, size = 0x4, scoped, tag = 'scoped memory for tpu_custom_call.1']
    #allocation4 [shape = 's32[1]{0}', space=sflag, size = 0x4, scoped, tag = 'scoped memory for tpu_custom_call.1']
    #allocation5 [shape = 'u8[8192]{0}', space=vmem, size = 0x2000, scoped, tag = 'input window, operand 1, single buffered']
    #allocation6 [shape = 's32[1]{0}', space=sflag, size = 0x4, scoped, tag = 'scoped memory for tpu_custom_call.1']
    #allocation7 [shape = 'u8[2048]{0}', space=vmem, size = 0x800, scoped, tag = 'output window, operand 0, single buffered']
    %7 = vsyncpa [#allocation3], 0
    %8 = vsyncpa [#allocation6], 0
    %9 = vsyncpa [#allocation4], 0
    // Predicated region
    $region2: #{tpu_custom_call.1} parent=1 // pred_check
      _
    $region3: #{tpu_custom_call.1} parent=1 // pred_check_branch
      %11 = sbr.rel (0) target = $region5
    $region4: #{tpu_custom_call.1} parent=1 // pred_region
      %13 = vsyncadd [#allocation3], 0
      %s15 = sshll.u32 %s0, 4
      %s16 = int_to_ptr.hbm [resolvable:$true] %s15
      %s17 = sshll.u32 [#allocation2], 4
      %s18 = int_to_ptr.vmem [resolvable:$true] %s17
      %20 = dma.hbm_to_vmem [thread:$0]  %s16, 32, %s18, [#allocation3]
    $region5: #{tpu_custom_call.1} parent=1 // pred_fallthru
      _
    // Predicated region
    $region6: #{tpu_custom_call.1} parent=1 // pred_check
      _
    $region7: #{tpu_custom_call.1} parent=1 // pred_check_branch
      %22 = sbr.rel (0) target = $region9
    $region8: #{tpu_custom_call.1} parent=1 // pred_region
      %24 = vsyncadd [#allocation6], 0
      %s25 = sshll.u32 %s1, 4
      %s26 = int_to_ptr.hbm [resolvable:$true] %s25
      %s27 = sshll.u32 [#allocation5], 4
      %s28 = int_to_ptr.vmem [resolvable:$true] %s27
      %33 = dma.hbm_to_vmem [thread:$0]  %s26, 256, %s28, [#allocation6], 64, 64, 4
    $region9: #{tpu_custom_call.1} parent=1 // pred_fallthru
      _
    // Predicated region
    $region10: #{tpu_custom_call.1} parent=1 // pred_check
      _
    $region11: #{tpu_custom_call.1} parent=1 // pred_check_branch
      %35 = sbr.rel (0) target = $region13
    $region12: #{tpu_custom_call.1} parent=1 // pred_region
      %37 = dma.done [#allocation3], 32
    $region13: #{tpu_custom_call.1} parent=1 // pred_fallthru
      _
    // Predicated region
    $region14: #{tpu_custom_call.1} parent=1 // pred_check
      _
    $region15: #{tpu_custom_call.1} parent=1 // pred_check_branch
      %39 = sbr.rel (0) target = $region17
    $region16: #{tpu_custom_call.1} parent=1 // pred_region
      %41 = dma.done [#allocation6], 256
    $region17: #{tpu_custom_call.1} parent=1 // pred_fallthru
      _
    %v42 = vld [vmem:[#allocation2] sm:$0x3]
    %v43 = vunpack.c.l.bf16 %v42
    %v44 = vld [vmem:[#allocation5] sm:$0xf]
    %v45 = vld [vmem:[#allocation5 + $0x4] sm:$0xf]
    %v46 = vld [vmem:[#allocation5 + $0x8] sm:$0xf]
    %v47 = vld [vmem:[#allocation5 + $0xc] sm:$0xf]
    %v48 = vunpack.c.l.bf16 %v44
    %v49 = vunpack.c.l.bf16 %v45
    %v50 = vunpack.c.l.bf16 %v46
    %v51 = vunpack.c.l.bf16 %v47
    %v53 = vrot.slane %v43, 3
    %vm54 = vcmask 1040384
    %v55 = vsel %vm54, %v43, %v53
    %vm56 = vcmask 1041409
    %v57 = vsel %vm56, %v43, %v53
    %v58 = vrot.slane %v57, 1
    %vm59 = vcmask 1042434
    %v60 = vsel %vm59, %v43, %v53
    %v61 = vrot.slane %v60, 2
    %vm62 = vcmask 1043459
    %v63 = vsel %vm62, %v43, %v53
    %v64 = vrot.slane %v63, 3
    %v65 = vperm.slane %v55, 0
    %v66 = vperm.slane %v58, 0
    %v67 = vperm.slane %v61, 0
    %v68 = vperm.slane %v64, 0
    %v73 = vmul.f32 %v48, %v65
    %v74 = vmul.f32 %v49, %v66
    %v75 = vmul.f32 %v50, %v67
    %v76 = vmul.f32 %v51, %v68
    %vm77 = vcmask 261120
    %v78 = vsel %vm77, %v73, 0.0
    %79 = vadd.xlane.f32.xlu0 %v78
    %v80 = vpop.xlane.xlu0 %79
    %v81 = vsel %vm77, %v74, 0.0
    %82 = vadd.xlane.f32.xlu0 %v81
    %v83 = vpop.xlane.xlu0 %82
    %v84 = vsel %vm77, %v75, 0.0
    %85 = vadd.xlane.f32.xlu0 %v84
    %v86 = vpop.xlane.xlu0 %85
    %v87 = vsel %vm77, %v76, 0.0
    %88 = vadd.xlane.f32.xlu0 %v87
    %v89 = vpop.xlane.xlu0 %88
    %v94 = vlaneseq
    %v95 = vand.u32 %v94, 127
    %v96 = vperm.slane %v80, %v95
    %v97 = vperm.slane %v83, %v95
    %v98 = vperm.slane %v86, %v95
    %v99 = vperm.slane %v89, %v95
    %v100 = vsel %vm56, %v97, %v96
    %v101 = vsel %vm59, %v98, %v100
    %v102 = vsel %vm62, %v99, %v101
    %vm104 = vcmask 60416
    %105 = vst.msk [vmem:[#allocation7] sm:$0xf] %vm104, %v102
    // Predicated region
    $region18: #{tpu_custom_call.1} parent=1 // pred_check
      _
    $region19: #{tpu_custom_call.1} parent=1 // pred_check_branch
      %107 = sbr.rel (0) target = $region21
    $region20: #{tpu_custom_call.1} parent=1 // pred_region
      %109 = vsyncadd [#allocation4], 0
      %s111 = sshll.u32 [#allocation7], 4
      %s112 = int_to_ptr.vmem [resolvable:$true] %s111
      %s113 = sshll.u32 %s2, 4
      %s114 = int_to_ptr.hbm [resolvable:$true] %s113
      %116 = dma.vmem_to_hbm [thread:$0]  %s112, 64, %s114, [#allocation4]
    $region21: #{tpu_custom_call.1} parent=1 // pred_fallthru
      _
    // Predicated region
    $region22: #{tpu_custom_call.1} parent=1 // pred_check
      _
    $region23: #{tpu_custom_call.1} parent=1 // pred_check_branch
      %118 = sbr.rel (0) target = $region25
    $region24: #{tpu_custom_call.1} parent=1 // pred_region
      %120 = dma.done [#allocation4], 64
    $region25: #{tpu_custom_call.1} parent=1 // pred_fallthru
      _
    %121 = vsyncpa [#allocation3], 1
    %122 = vsyncpa [#allocation6], 1
    %123 = vsyncpa [#allocation4], 1

</llo_original>
